<compile_context>
chip_gen: v6e
topology: v6e:2x2x1
jax: 0.10.0
libtpu: 0.0.40
codegen_flags: <defaults>
</compile_context>

<pallas_src>
import functools
import math

import jax
import jax.numpy as jnp
from jax.experimental import pallas as pl
from jax.experimental.pallas import tpu as pltpu


def _to_float_normalize_kernel(x_ref, o_ref, *, inv):
    # x_ref: VMEM tile (block_rows, lane) of the raw input (any int/float dtype)
    # o_ref: VMEM tile (block_rows, lane) float32
    # `inv` is a Python float baked in at trace time (no SMEM read, no divide).
    o_ref[...] = x_ref[...].astype(jnp.float32) * inv


def to_float_and_normalize(x: jax.Array, normalize_factor: float,
                           *, max_block_rows: int = 2048) -> jax.Array:
    """out = x.astype(float32) / normalize_factor, elementwise, any shape/dtype."""
    orig_shape = x.shape
    n = int(math.prod(orig_shape)) if len(orig_shape) else 1
    inv = float(1.0 / float(normalize_factor))
    itemsize = x.dtype.itemsize

    if n == 0:
        # Degenerate empty input: nothing for a kernel to do.
        return (x.astype(jnp.float32) * inv).reshape(orig_shape)

    x_flat = jnp.ravel(x)  # contiguous -> free reshape, no HBM pass

    # ---- Lane choice: avoid padding entirely whenever n % 128 == 0 ----------
    lane = None
    for cand in (1024, 512, 256, 128):
        if n % cand == 0:
            lane = cand
            break
    padded = lane is None
    if padded:
        # Rare fallback (n not a multiple of 128): pad up to next multiple.
        lane = 128
        n_pad = pl.cdiv(n, lane) * lane
        x_flat = jnp.pad(x_flat, (0, n_pad - n))
    else:
        n_pad = n

    rows = n_pad // lane

    # ---- Block/grid derivation (host-side math) ------------------------------
    # Sublane alignment for packed dtypes: 32 (int8/fp8), 16 (int16/bf16), 8 (f32).
    row_align = max(8, 32 // max(1, itemsize))

    if rows <= row_align:
        block_rows = rows                     # single block == full array dims
    else:
        # Prefer >= 8 grid steps (keeps both v7x TensorCores busy) when the
        # input is big enough; otherwise just one-or-few big blocks.
        min_blocks = 8 if rows >= 8 * row_align else 1
        n_blocks = max(min_blocks, pl.cdiv(rows, max_block_rows))
        block_rows = pl.cdiv(pl.cdiv(rows, n_blocks), row_align) * row_align
        block_rows = min(block_rows, max_block_rows)
        if block_rows >= rows:
            block_rows = rows                 # full dim, single block
    grid_n = pl.cdiv(rows, block_rows)        # last block may be partial (masked)

    x2d = x_flat.reshape(rows, lane)

    # Scoped-VMEM limit: double-buffered in + out tiles, with margin.  Needed on
    # v5e (16 MiB default scoped limit); harmless and within budget on v6e/v7x.
    tile_bytes = block_rows * lane * (itemsize + 4)
    vmem_limit = int(min(48 << 20, max(32 << 20, 2 * tile_bytes + (4 << 20))))

    out2d = pl.pallas_call(
        functools.partial(_to_float_normalize_kernel, inv=inv),
        out_shape=jax.ShapeDtypeStruct((rows, lane), jnp.float32),
        grid=(grid_n,),
        in_specs=[pl.BlockSpec((block_rows, lane), lambda i: (i, 0))],
        out_specs=pl.BlockSpec((block_rows, lane), lambda i: (i, 0)),
        compiler_params=pltpu.CompilerParams(
            dimension_semantics=("parallel",),
            vmem_limit_bytes=vmem_limit),
        cost_estimate=pl.CostEstimate(
            flops=n_pad,
            transcendentals=0,
            bytes_accessed=n_pad * (itemsize + 4)),
    )(x2d)

    out = out2d.reshape(-1)
    if padded:
        out = out[:n]
    return out.reshape(orig_shape)


if __name__ == "__main__":
    key = jax.random.PRNGKey(0)
    B, T = 2, 2048  # small speech-like batch: 2 waveforms, 2048 samples each
    # deterministic int16 "PCM" samples
    x_i32 = jax.random.randint(key, (B, T), minval=-32768, maxval=32768,
                               dtype=jnp.int32)
    x = x_i32.astype(jnp.int16)

    factor = 32768.0  # typical int16 -> [-1, 1) normalization factor

    out = to_float_and_normalize(x, factor)
    out = jax.block_until_ready(out)

    # reference check (plain JAX, mirrors torch: x.float() / factor)
    ref = x.astype(jnp.float32) / factor
    assert out.dtype == jnp.float32
    assert out.shape == (B, T)
    assert jnp.allclose(out, ref, atol=1e-6, rtol=1e-6)

    print("KERNEL_OK")
</pallas_src>

<mosaic_0001>
module attributes {stable_mosaic.version = 11 : i64} {
  func.func @_to_float_normalize_kernel(%arg0: i32, %arg1: memref<4x1024xi16, #tpu.memory_space<vmem>>, %arg2: memref<4x1024xf32, #tpu.memory_space<vmem>>) attributes {dimension_semantics = [#tpu.dimension_semantics<parallel>], iteration_bounds = array<i64: 1>, scalar_prefetch = 0 : i64, scratch_operands = 0 : i64, tpu.core_type = #tpu.core_type<tc>, window_params = [{transform_indices = @transform_0, window_bounds = array<i64: 4, 1024>}, {transform_indices = @transform_1, window_bounds = array<i64: 4, 1024>}]} {
    %c0 = arith.constant 0 : index
    %c0_0 = arith.constant 0 : index
    %0 = vector.load %arg1[%c0, %c0_0] : memref<4x1024xi16, #tpu.memory_space<vmem>>, vector<4x1024xi16>
    %1 = arith.sitofp %0 : vector<4x1024xi16> to vector<4x1024xf32>
    %cst = arith.constant 3.05175781E-5 : f32
    %2 = vector.broadcast %cst : f32 to vector<4x1024xf32>
    %3 = arith.mulf %1, %2 : vector<4x1024xf32>
    %c0_1 = arith.constant 0 : index
    %c0_2 = arith.constant 0 : index
    %4 = vector.load %arg2[%c0_1, %c0_2] : memref<4x1024xf32, #tpu.memory_space<vmem>>, vector<4x1024xf32>
    tpu.vector_store %arg2[%c0_1, %c0_2], %3 {strides = array<i32>} : memref<4x1024xf32, #tpu.memory_space<vmem>>, vector<4x1024xf32>,
    return
  }
  func.func @transform_0(%arg0: i32) -> (i32, i32) {
    %c0_i32 = arith.constant 0 : i32
    %c0_i32_0 = arith.constant 0 : i32
    return %arg0, %c0_i32 : i32, i32
  }
  func.func @transform_1(%arg0: i32) -> (i32, i32) {
    %c0_i32 = arith.constant 0 : i32
    %c0_i32_0 = arith.constant 0 : i32
    return %arg0, %c0_i32 : i32, i32
  }
}

</mosaic_0001>

<llo_original>
// kernel: tpu_custom_call.1
$region0: #{tpu_custom_call.1}
  #allocation0 [shape = 'u32[]', space=smem, size = 0x4, offset = 0x4, fixed_abs, tag = 'smem constant byte address 0x4 - core index']
  #allocation1 [shape = 'u32[144,128]{1,0:T(1,128)}', space=vmem, size = 0x12000, scoped, tag = 'internal scratch']
  %s0 = inlined_call_operand.hbm [shape: s16[4,1024], index: 0, kind: input, shape index: {}]
  %s1 = inlined_call_operand.hbm [shape: f32[4,1024], index: 1, kind: output, shape index: {}]
  %s2 = sld [smem:[#allocation0]]
  $region18: #{tpu_custom_call.1} parent=0
    _
  %s4 = ssub.s32 1, %s2
  %s5 = scalar_select 0, %s4, %s2
  $region1: #{tpu_custom_call.1} parent=0
    #allocation2 [shape = 'u8[8192]{0}', space=vmem, size = 0x2000, scoped, tag = 'input window, operand 0, single buffered']
    #allocation3 [shape = 's32[1]{0}', space=sflag, size = 0x4, scoped, tag = 'scoped memory for tpu_custom_call.1']
    #allocation4 [shape = 's32[1]{0}', space=sflag, size = 0x4, scoped, tag = 'scoped memory for tpu_custom_call.1']
    #allocation5 [shape = 'u8[16384]{0}', space=vmem, size = 0x4000, scoped, tag = 'output window, operand 0, single buffered']
    %6 = vsyncpa [#allocation3], 0
    %7 = vsyncpa [#allocation4], 0
    // Predicated region
    $region2: #{tpu_custom_call.1} parent=1 // pred_check
      _
    $region3: #{tpu_custom_call.1} parent=1 // pred_check_branch
      %9 = sbr.rel (0) target = $region5
    $region4: #{tpu_custom_call.1} parent=1 // pred_region
      %s11 = ssub.s32 256, 256
      %12 = vsyncadd [#allocation3], %s11
      %s14 = sshll.u32 [#allocation2], 4
      %s15 = int_to_ptr.vmem [resolvable:$true] %s14
      %17 = dma.hbm_to_vmem [thread:$0]  %s0, 256, %s15, [#allocation3]
    $region5: #{tpu_custom_call.1} parent=1 // pred_fallthru
      _
    // Predicated region
    $region6: #{tpu_custom_call.1} parent=1 // pred_check
      _
    $region7: #{tpu_custom_call.1} parent=1 // pred_check_branch
      %19 = sbr.rel (0) target = $region9
    $region8: #{tpu_custom_call.1} parent=1 // pred_region
      %20 = dma.done [#allocation3], 256
    $region9: #{tpu_custom_call.1} parent=1 // pred_fallthru
      _
    %v21 = vld [vmem:[#allocation2] sm:$0xff]
    %v22 = vld [vmem:[#allocation2 + $0x8] sm:$0xff]
    %v23 = vunpack.c.l.b16 %v21
    %v24 = vunpack.c.h.b16 %v21
    %v25 = vunpack.c.l.b16 %v22
    %v26 = vunpack.c.h.b16 %v22
    %v27 = vcvt.s32.f32 %v23
    %v28 = vcvt.s32.f32 %v24
    %v29 = vcvt.s32.f32 %v25
    %v30 = vcvt.s32.f32 %v26
    %v31 = vmul.f32 %v27, 3.0517578e-05
    %v32 = vmul.f32 %v28, 3.0517578e-05
    %v33 = vmul.f32 %v29, 3.0517578e-05
    %v34 = vmul.f32 %v30, 3.0517578e-05
    %35 = vst [vmem:[#allocation5] sm:$0xff] %v31
    %36 = vst [vmem:[#allocation5 + $0x8] sm:$0xff] %v32
    %37 = vst [vmem:[#allocation5 + $0x10] sm:$0xff] %v33
    %38 = vst [vmem:[#allocation5 + $0x18] sm:$0xff] %v34
    // Predicated region
    $region10: #{tpu_custom_call.1} parent=1 // pred_check
      _
    $region11: #{tpu_custom_call.1} parent=1 // pred_check_branch
      %40 = sbr.rel (0) target = $region13
    $region12: #{tpu_custom_call.1} parent=1 // pred_region
      %s42 = ssub.s32 512, 512
      %43 = vsyncadd [#allocation4], %s42
      %s45 = sshll.u32 [#allocation5], 4
      %s46 = int_to_ptr.vmem [resolvable:$true] %s45
      %48 = dma.vmem_to_hbm [thread:$0]  %s46, 512, %s1, [#allocation4]
    $region13: #{tpu_custom_call.1} parent=1 // pred_fallthru
      _
    // Predicated region
    $region14: #{tpu_custom_call.1} parent=1 // pred_check
      _
    $region15: #{tpu_custom_call.1} parent=1 // pred_check_branch
      %50 = sbr.rel (0) target = $region17
    $region16: #{tpu_custom_call.1} parent=1 // pred_region
      %51 = dma.done [#allocation4], 512
    $region17: #{tpu_custom_call.1} parent=1 // pred_fallthru
      _
    %52 = vsyncpa [#allocation3], 1
    %53 = vsyncpa [#allocation4], 1

</llo_original>
